<compile_context>
chip_gen: v7x
topology: tpu7x:2x2x1
jax: 0.10.0
libtpu: 0.0.40
codegen_flags: <defaults>
</compile_context>

<pallas_src>
import functools

import jax
import jax.numpy as jnp
from jax.experimental import pallas as pl
from jax.experimental.pallas import tpu as pltpu


def _round_up(x, m):
    return ((x + m - 1) // m) * m


# -----------------------------------------------------------------------------
# Pallas kernel: Conv1d + ReLU + AttentivePooling for TB batch rows.
# -----------------------------------------------------------------------------
def _news_encoder_kernel(x_ref, mask_ref, wc_ref, bc_ref, w1_ref, b1_ref,
                         w2_ref, b2_ref, out_ref, *, seq_len, window):
    tb = x_ref.shape[0]
    e = x_ref.shape[2]
    f_pad = wc_ref.shape[1]
    h_pad = w1_ref.shape[1]

    xp = x_ref[...]                                           # (TB, Sp, E) bf16

    # --- Conv1d('same') as a single im2col MXU matmul: (TB*S, W*E) x (W*E, F_pad)
    cols = [xp[:, w:w + seq_len, :] for w in range(window)]   # static unroll, W small
    xcol = jnp.concatenate(cols, axis=-1) if window > 1 else cols[0]
    xcol = xcol.reshape(tb * seq_len, window * e)

    conv = jnp.dot(xcol, wc_ref[...], preferred_element_type=jnp.float32)
    conv = jnp.maximum(conv + bc_ref[...], 0.0)               # (TB*S, F_pad) f32

    # --- AttentivePooling fc1 on the MXU (bf16 in, f32 accumulate)
    h = jnp.tanh(
        jnp.dot(conv.astype(w1_ref.dtype), w1_ref[...],
                preferred_element_type=jnp.float32) + b1_ref[...])   # (TB*S, H_pad)

    # --- fc2 (N=1) on the VPU: lane-reduce over H -> logits (TB, S), S on lanes
    h3 = h.reshape(tb, seq_len, h_pad)
    w2_row = w2_ref[...].reshape(1, 1, h_pad)                 # f32
    logits = jnp.sum(h3 * w2_row, axis=-1) + b2_ref[0, 0]     # (TB, S) f32

    # --- mask fill + softmax over the sequence (lane) axis, all in f32
    logits = jnp.where(mask_ref[...] < 0.5, -1000000000.0, logits)
    logits = logits - jnp.max(logits, axis=-1, keepdims=True)
    p = jnp.exp(logits)
    denom = jnp.sum(p, axis=-1, keepdims=True)                # (TB, 1)
    alpha = p * pl.reciprocal(denom, approx=True)             # EUP recip, VPU mul

    # --- r[b, f] = sum_s alpha[b, s] * conv[b, s, f]
    conv3 = conv.reshape(tb, seq_len, f_pad)
    r = jnp.sum(alpha[:, :, None] * conv3, axis=1)            # (TB, F_pad)
    out_ref[...] = r.astype(out_ref.dtype)


# -----------------------------------------------------------------------------
# Wrapper: param re-layout / padding + pallas_call.
# -----------------------------------------------------------------------------
def news_encoder_forward(news, masks, params, *, n_title, window_size,
                         block_batch=128):
    assert window_size % 2 == 1, "odd window so Conv1d('same') keeps seq length"

    title = news[:, :n_title].astype(jnp.int32)               # (B, S)
    title_mask = masks[:, :n_title].astype(jnp.float32)       # (B, S)

    B, S = title.shape
    E = params["word_emb"].shape[1]
    F = params["conv_b"].shape[0]
    H = params["fc1_b"].shape[0]
    W = window_size
    pad = W // 2
    Sp = S + W - 1
    F_pad = _round_up(F, 128)
    H_pad = _round_up(H, 128)

    # Batch blocking (TB rows per grid step).
    if B <= block_batch:
        TB = B
    else:
        TB = max(8, (block_batch // 8) * 8)                   # keep (8,*) tiling clean
    Bp = _round_up(B, TB)

    # Embedding table with an extra all-zero row used as the Conv1d 'same' halo,
    # so the gather directly produces the padded sequence (no HBM pad copy).
    emb = jnp.concatenate(
        [params["word_emb"].astype(jnp.bfloat16),
         jnp.zeros((1, E), jnp.bfloat16)], axis=0)
    pad_id = params["word_emb"].shape[0]

    title_p = jnp.pad(title, ((0, Bp - B), (pad, pad)), constant_values=pad_id)
    mask_p = jnp.pad(title_mask, ((0, Bp - B), (0, 0)), constant_values=1.0)

    x_emb = jnp.take(emb, title_p, axis=0)                    # (Bp, Sp, E) bf16

    # Parameter re-layout (lane-dense: F, H padded to multiples of 128).
    wc = jnp.transpose(params["conv_w"], (2, 1, 0)).reshape(W * E, F)
    wc = jnp.pad(wc, ((0, 0), (0, F_pad - F))).astype(jnp.bfloat16)       # (W*E, F_pad)
    bc = jnp.pad(params["conv_b"], (0, F_pad - F)).reshape(1, F_pad).astype(jnp.float32)
    w1 = jnp.pad(params["fc1_w"].T,
                 ((0, F_pad - F), (0, H_pad - H))).astype(jnp.bfloat16)   # (F_pad, H_pad)
    b1 = jnp.pad(params["fc1_b"], (0, H_pad - H)).reshape(1, H_pad).astype(jnp.float32)
    w2 = jnp.pad(params["fc2_w"],
                 ((0, 0), (0, H_pad - H))).astype(jnp.float32)            # (1, H_pad)
    b2 = params["fc2_b"].reshape(1, 1).astype(jnp.float32)                # SMEM scalar

    kernel = functools.partial(_news_encoder_kernel, seq_len=S, window=W)

    out = pl.pallas_call(
        kernel,
        out_shape=jax.ShapeDtypeStruct((Bp, F_pad), jnp.float32),
        grid_spec=pltpu.PrefetchScalarGridSpec(
            num_scalar_prefetch=0,
            grid=(Bp // TB,),
            in_specs=[
                pl.BlockSpec((TB, Sp, E), lambda b: (b, 0, 0)),   # padded embeddings (bf16)
                pl.BlockSpec((TB, S), lambda b: (b, 0)),          # title mask (f32)
                pl.BlockSpec((W * E, F_pad), lambda b: (0, 0)),   # im2col conv weight
                pl.BlockSpec((1, F_pad), lambda b: (0, 0)),       # conv bias
                pl.BlockSpec((F_pad, H_pad), lambda b: (0, 0)),   # fc1 weight^T
                pl.BlockSpec((1, H_pad), lambda b: (0, 0)),       # fc1 bias
                pl.BlockSpec((1, H_pad), lambda b: (0, 0)),       # fc2 weight row (f32, VPU)
                pl.BlockSpec(memory_space=pltpu.MemorySpace.SMEM),  # fc2 bias scalar
            ],
            out_specs=pl.BlockSpec((TB, F_pad), lambda b: (b, 0)),
        ),
        compiler_params=pltpu.CompilerParams(
            dimension_semantics=("parallel",),
            vmem_limit_bytes=48 * 1024 * 1024),
    )(x_emb, mask_p, wc, bc, w1, b1, w2, b2)

    return out[:B, :F]


# -----------------------------------------------------------------------------
# Pure-JAX reference (mirrors the PyTorch forward, eval mode, f32).
# -----------------------------------------------------------------------------
def news_encoder_reference(news, masks, params, *, n_title, window_size):
    title = news[:, :n_title]
    mask = masks[:, :n_title].astype(jnp.float32)
    x = jnp.take(params["word_emb"], title, axis=0).astype(jnp.float32)  # (B,S,E)
    pad = window_size // 2
    xp = jnp.pad(x, ((0, 0), (pad, pad), (0, 0)))
    cw = params["conv_w"]                                     # (F, E, W)
    S = n_title
    conv = sum(
        jnp.einsum("bse,fe->bsf", xp[:, w:w + S, :], cw[:, :, w])
        for w in range(window_size)
    ) + params["conv_b"]
    conv = jnp.maximum(conv, 0.0)
    h = jnp.tanh(conv @ params["fc1_w"].T + params["fc1_b"])
    a = h @ params["fc2_w"].T + params["fc2_b"]               # (B,S,1)
    a = jnp.where(mask[:, :, None] == 0.0, -1000000000.0, a)
    alpha = jax.nn.softmax(a, axis=1)
    return jnp.sum(alpha * conv, axis=1)                      # (B, F)


# -----------------------------------------------------------------------------
if __name__ == "__main__":
    key = jax.random.PRNGKey(0)
    ks = jax.random.split(key, 10)

    # Small, module-consistent shapes.
    vocab, word_emb_dim = 50, 32
    cate_vocab, cate_emb_dim = 10, 8
    filter_num, window_size, query_dim = 16, 3, 16
    n_title, n_body = 8, 6
    batch = 2

    params = {
        "word_emb": jax.random.normal(ks[0], (vocab, word_emb_dim), jnp.float32) * 0.1,
        "cate_emb": jax.random.normal(ks[1], (cate_vocab, cate_emb_dim), jnp.float32) * 0.1,
        "conv_w": jax.random.normal(ks[2], (filter_num, word_emb_dim, window_size), jnp.float32) * 0.1,
        "conv_b": jax.random.normal(ks[3], (filter_num,), jnp.float32) * 0.1,
        "fc1_w": jax.random.normal(ks[4], (query_dim, filter_num), jnp.float32) * 0.1,
        "fc1_b": jax.random.normal(ks[5], (query_dim,), jnp.float32) * 0.1,
        "fc2_w": jax.random.normal(ks[6], (1, query_dim), jnp.float32) * 0.1,
        "fc2_b": jax.random.normal(ks[7], (1,), jnp.float32) * 0.1,
    }

    # news = [title tokens | body tokens | cate | subcate]
    title_body = jax.random.randint(ks[8], (batch, n_title + n_body), 0, vocab)
    cates = jax.random.randint(ks[9], (batch, 2), 0, cate_vocab)
    news = jnp.concatenate([title_body, cates], axis=1).astype(jnp.int32)

    masks = (jax.random.uniform(ks[8], (batch, n_title + n_body)) > 0.3).astype(jnp.float32)
    masks = masks.at[:, 0].set(1.0)  # ensure at least one valid title token per row

    out = news_encoder_forward(news, masks, params,
                               n_title=n_title, window_size=window_size)
    out = jax.block_until_ready(out)

    ref = news_encoder_reference(news, masks, params,
                                 n_title=n_title, window_size=window_size)
    assert out.shape == (batch, filter_num), out.shape
    # bf16 matmul inputs (f32 accumulation / f32 softmax) -> slightly looser tol.
    assert jnp.allclose(out, ref, atol=5e-3, rtol=5e-3), (out, ref)

    print("KERNEL_OK")
</pallas_src>

<mosaic_0001>
module attributes {stable_mosaic.version = 11 : i64} {
  func.func @_news_encoder_kernel(%arg0: i32, %arg1: memref<2x10x32xbf16, #tpu.memory_space<vmem>>, %arg2: memref<2x8xf32, #tpu.memory_space<vmem>>, %arg3: memref<96x128xbf16, #tpu.memory_space<vmem>>, %arg4: memref<1x128xf32, #tpu.memory_space<vmem>>, %arg5: memref<128x128xbf16, #tpu.memory_space<vmem>>, %arg6: memref<1x128xf32, #tpu.memory_space<vmem>>, %arg7: memref<1x128xf32, #tpu.memory_space<vmem>>, %arg8: memref<1x1xf32, #tpu.memory_space<smem>>, %arg9: memref<2x128xf32, #tpu.memory_space<vmem>>) attributes {dimension_semantics = [#tpu.dimension_semantics<parallel>], iteration_bounds = array<i64: 1>, scalar_prefetch = 0 : i64, scratch_operands = 0 : i64, tpu.core_type = #tpu.core_type<tc>, window_params = [{transform_indices = @transform_0, window_bounds = array<i64: 2, 10, 32>}, {transform_indices = @transform_1, window_bounds = array<i64: 2, 8>}, {pipeline_mode = #tpu.pipeline_mode<synchronous>, transform_indices = @transform_2, window_bounds = array<i64: 96, 128>}, {pipeline_mode = #tpu.pipeline_mode<synchronous>, transform_indices = @transform_3, window_bounds = array<i64: 1, 128>}, {pipeline_mode = #tpu.pipeline_mode<synchronous>, transform_indices = @transform_4, window_bounds = array<i64: 128, 128>}, {pipeline_mode = #tpu.pipeline_mode<synchronous>, transform_indices = @transform_5, window_bounds = array<i64: 1, 128>}, {pipeline_mode = #tpu.pipeline_mode<synchronous>, transform_indices = @transform_6, window_bounds = array<i64: 1, 128>}, {transform_indices = @transform_7, window_bounds = array<i64: 1, 1>}, {transform_indices = @transform_8, window_bounds = array<i64: 2, 128>}]} {
    %c0 = arith.constant 0 : index
    %c0_0 = arith.constant 0 : index
    %c0_1 = arith.constant 0 : index
    %0 = vector.load %arg1[%c0, %c0_0, %c0_1] : memref<2x10x32xbf16, #tpu.memory_space<vmem>>, vector<2x10x32xbf16>
    %1 = vector.extract_strided_slice %0 {offsets = [0, 0, 0], sizes = [2, 8, 32], strides = [1, 1, 1]} : vector<2x10x32xbf16> to vector<2x8x32xbf16>
    %2 = vector.extract_strided_slice %0 {offsets = [0, 1, 0], sizes = [2, 8, 32], strides = [1, 1, 1]} : vector<2x10x32xbf16> to vector<2x8x32xbf16>
    %3 = vector.extract_strided_slice %0 {offsets = [0, 2, 0], sizes = [2, 8, 32], strides = [1, 1, 1]} : vector<2x10x32xbf16> to vector<2x8x32xbf16>
    %4 = tpu.concatenate %1, %2, %3 in 2 : vector<2x8x32xbf16>, vector<2x8x32xbf16>, vector<2x8x32xbf16> -> vector<2x8x96xbf16>
    %5 = vector.shape_cast %4 : vector<2x8x96xbf16> to vector<16x96xbf16>
    %c0_2 = arith.constant 0 : index
    %c0_3 = arith.constant 0 : index
    %6 = vector.load %arg3[%c0_2, %c0_3] : memref<96x128xbf16, #tpu.memory_space<vmem>>, vector<96x128xbf16>
    %cst = arith.constant dense<0.000000e+00> : vector<16x128xf32>
    %7 = tpu.matmul %5, %6, %cst {dimension_numbers = #tpu.dot_dimension_numbers<[1], [0], [0], [1], [0, 0, 1, 1], [], []>} : vector<16x96xbf16>, vector<96x128xbf16>, vector<16x128xf32> -> vector<16x128xf32>
    %c0_4 = arith.constant 0 : index
    %c0_5 = arith.constant 0 : index
    %8 = vector.load %arg4[%c0_4, %c0_5] : memref<1x128xf32, #tpu.memory_space<vmem>>, vector<1x128xf32>
    %9 = vector.broadcast %8 : vector<1x128xf32> to vector<16x128xf32>
    %10 = arith.addf %7, %9 : vector<16x128xf32>
    %cst_6 = arith.constant 0.000000e+00 : f32
    %11 = vector.broadcast %cst_6 : f32 to vector<16x128xf32>
    %12 = arith.maximumf %10, %11 : vector<16x128xf32>
    %13 = arith.truncf %12 : vector<16x128xf32> to vector<16x128xbf16>
    %c0_7 = arith.constant 0 : index
    %c0_8 = arith.constant 0 : index
    %14 = vector.load %arg5[%c0_7, %c0_8] : memref<128x128xbf16, #tpu.memory_space<vmem>>, vector<128x128xbf16>
    %cst_9 = arith.constant dense<0.000000e+00> : vector<16x128xf32>
    %15 = tpu.matmul %13, %14, %cst_9 {dimension_numbers = #tpu.dot_dimension_numbers<[1], [0], [0], [1], [0, 0, 1, 1], [], []>} : vector<16x128xbf16>, vector<128x128xbf16>, vector<16x128xf32> -> vector<16x128xf32>
    %c0_10 = arith.constant 0 : index
    %c0_11 = arith.constant 0 : index
    %16 = vector.load %arg6[%c0_10, %c0_11] : memref<1x128xf32, #tpu.memory_space<vmem>>, vector<1x128xf32>
    %17 = vector.broadcast %16 : vector<1x128xf32> to vector<16x128xf32>
    %18 = arith.addf %15, %17 : vector<16x128xf32>
    %19 = math.tanh %18 : vector<16x128xf32>
    %20 = vector.shape_cast %19 : vector<16x128xf32> to vector<2x8x128xf32>
    %c0_12 = arith.constant 0 : index
    %c0_13 = arith.constant 0 : index
    %21 = vector.load %arg7[%c0_12, %c0_13] : memref<1x128xf32, #tpu.memory_space<vmem>>, vector<1x128xf32>
    %22 = vector.shape_cast %21 : vector<1x128xf32> to vector<1x1x128xf32>
    %23 = vector.broadcast %22 : vector<1x1x128xf32> to vector<2x8x128xf32>
    %24 = arith.mulf %20, %23 : vector<2x8x128xf32>
    %cst_14 = arith.constant dense<0.000000e+00> : vector<2x8xf32>
    %25 = vector.multi_reduction <add>, %24, %cst_14 [2] : vector<2x8x128xf32> to vector<2x8xf32>
    %c0_15 = arith.constant 0 : index
    %c0_16 = arith.constant 0 : index
    %26 = memref.load %arg8[%c0_15, %c0_16] : memref<1x1xf32, #tpu.memory_space<smem>>
    %27 = vector.broadcast %26 : f32 to vector<2x8xf32>
    %28 = arith.addf %25, %27 : vector<2x8xf32>
    %c0_17 = arith.constant 0 : index
    %c0_18 = arith.constant 0 : index
    %29 = vector.load %arg2[%c0_17, %c0_18] : memref<2x8xf32, #tpu.memory_space<vmem>>, vector<2x8xf32>
    %cst_19 = arith.constant 5.000000e-01 : f32
    %30 = vector.broadcast %cst_19 : f32 to vector<2x8xf32>
    %31 = arith.cmpf olt, %29, %30 : vector<2x8xf32>
    %cst_20 = arith.constant -1.000000e+09 : f32
    %32 = vector.broadcast %cst_20 : f32 to vector<2x8xf32>
    %33 = arith.select %31, %32, %28 : vector<2x8xi1>, vector<2x8xf32>
    %cst_21 = arith.constant dense<0xFF800000> : vector<2xf32>
    %34 = vector.multi_reduction <maximumf>, %33, %cst_21 [1] : vector<2x8xf32> to vector<2xf32>
    %35 = vector.shape_cast %34 : vector<2xf32> to vector<2x1xf32>
    %36 = vector.broadcast %35 : vector<2x1xf32> to vector<2x8xf32>
    %37 = arith.subf %33, %36 : vector<2x8xf32>
    %38 = math.exp %37 : vector<2x8xf32>
    %cst_22 = arith.constant dense<0.000000e+00> : vector<2xf32>
    %39 = vector.multi_reduction <add>, %38, %cst_22 [1] : vector<2x8xf32> to vector<2xf32>
    %40 = vector.shape_cast %39 : vector<2xf32> to vector<2x1xf32>
    %41 = tpu.reciprocal %40 {approx = true} : vector<2x1xf32> -> vector<2x1xf32>
    %42 = vector.broadcast %41 : vector<2x1xf32> to vector<2x8xf32>
    %43 = arith.mulf %38, %42 : vector<2x8xf32>
    %44 = vector.shape_cast %12 : vector<16x128xf32> to vector<2x8x128xf32>
    %45 = vector.shape_cast %43 : vector<2x8xf32> to vector<2x8x1xf32>
    %46 = vector.broadcast %45 : vector<2x8x1xf32> to vector<2x8x128xf32>
    %47 = arith.mulf %46, %44 : vector<2x8x128xf32>
    %cst_23 = arith.constant dense<0.000000e+00> : vector<2x128xf32>
    %48 = vector.multi_reduction <add>, %47, %cst_23 [1] : vector<2x8x128xf32> to vector<2x128xf32>
    %c0_24 = arith.constant 0 : index
    %c0_25 = arith.constant 0 : index
    %49 = vector.load %arg9[%c0_24, %c0_25] : memref<2x128xf32, #tpu.memory_space<vmem>>, vector<2x128xf32>
    tpu.vector_store %arg9[%c0_24, %c0_25], %48 {strides = array<i32>} : memref<2x128xf32, #tpu.memory_space<vmem>>, vector<2x128xf32>,
    return
  }
  func.func @transform_0(%arg0: i32) -> (i32, i32, i32) {
    %c0_i32 = arith.constant 0 : i32
    %c0_i32_0 = arith.constant 0 : i32
    %c0_i32_1 = arith.constant 0 : i32
    return %arg0, %c0_i32, %c0_i32_0 : i32, i32, i32
  }
  func.func @transform_1(%arg0: i32) -> (i32, i32) {
    %c0_i32 = arith.constant 0 : i32
    %c0_i32_0 = arith.constant 0 : i32
    return %arg0, %c0_i32 : i32, i32
  }
  func.func @transform_2(%arg0: i32) -> (i32, i32) {
    %c0_i32 = arith.constant 0 : i32
    %c0_i32_0 = arith.constant 0 : i32
    %c0_i32_1 = arith.constant 0 : i32
    return %c0_i32, %c0_i32_0 : i32, i32
  }
  func.func @transform_3(%arg0: i32) -> (i32, i32) {
    %c0_i32 = arith.constant 0 : i32
    %c0_i32_0 = arith.constant 0 : i32
    %c0_i32_1 = arith.constant 0 : i32
    return %c0_i32, %c0_i32_0 : i32, i32
  }
  func.func @transform_4(%arg0: i32) -> (i32, i32) {
    %c0_i32 = arith.constant 0 : i32
    %c0_i32_0 = arith.constant 0 : i32
    %c0_i32_1 = arith.constant 0 : i32
    return %c0_i32, %c0_i32_0 : i32, i32
  }
  func.func @transform_5(%arg0: i32) -> (i32, i32) {
    %c0_i32 = arith.constant 0 : i32
    %c0_i32_0 = arith.constant 0 : i32
    %c0_i32_1 = arith.constant 0 : i32
    return %c0_i32, %c0_i32_0 : i32, i32
  }
  func.func @transform_6(%arg0: i32) -> (i32, i32) {
    %c0_i32 = arith.constant 0 : i32
    %c0_i32_0 = arith.constant 0 : i32
    %c0_i32_1 = arith.constant 0 : i32
    return %c0_i32, %c0_i32_0 : i32, i32
  }
  func.func @transform_7(%arg0: i32) -> (i32, i32) {
    %c0_i32 = arith.constant 0 : i32
    %c0_i32_0 = arith.constant 0 : i32
    %c0_i32_1 = arith.constant 0 : i32
    return %c0_i32, %c0_i32_0 : i32, i32
  }
  func.func @transform_8(%arg0: i32) -> (i32, i32) {
    %c0_i32 = arith.constant 0 : i32
    %c0_i32_0 = arith.constant 0 : i32
    return %arg0, %c0_i32 : i32, i32
  }
}

</mosaic_0001>

<llo_original>
// kernel: tpu_custom_call.1
$region0: #{tpu_custom_call.1}
  #allocation0 [shape = 'u32[]', space=smem, size = 0x4, offset = 0x4, fixed_abs, tag = 'smem constant byte address 0x4 - core index']
  #allocation1 [shape = 'u32[144,128]{1,0:T(1,128)}', space=vmem, size = 0x12000, scoped, tag = 'internal scratch']
  #allocation2 [shape = 'f32[1,1]{1,0:T(1,128)S(6)}', space=smem, size = 0x200, scoped, tag = 'scoped memory for tpu_custom_call.1']
  %s0 = inlined_call_operand.vmem [shape: bf16[2,10,32], index: 0, kind: input, shape index: {}]
  %s1 = inlined_call_operand.vmem [shape: f32[2,8], index: 1, kind: input, shape index: {}]
  %s2 = inlined_call_operand.hbm [shape: bf16[96,128], index: 2, kind: input, shape index: {}]
  %s3 = inlined_call_operand.vmem [shape: f32[1,128], index: 3, kind: input, shape index: {}]
  %s4 = inlined_call_operand.hbm [shape: bf16[128,128], index: 4, kind: input, shape index: {}]
  %s5 = inlined_call_operand.vmem [shape: f32[1,128], index: 5, kind: input, shape index: {}]
  %s6 = inlined_call_operand.vmem [shape: f32[1,128], index: 6, kind: input, shape index: {}]
  %s7 = inlined_call_operand.<no memory space> [shape: f32[1,1], index: 7, kind: input, shape index: {}]
  %s8 = inlined_call_operand.hbm [shape: f32[2,128], index: 8, kind: output, shape index: {}]
  %s9 = sld [smem:[#allocation0]]
  $region50: #{tpu_custom_call.1} parent=0
    _
  %s11 = ssub.s32 1, %s9
  %s12 = scalar_select 0, %s11, %s9
  %13 = sst [smem:[#allocation2]] %s7
  $region1: #{tpu_custom_call.1} parent=0
    #allocation3 [shape = 'u8[24576]{0}', space=vmem, size = 0x6000, scoped, tag = 'input window, operand 2, single buffered']
    #allocation4 [shape = 's32[1]{0}', space=sflag, size = 0x4, scoped, tag = 'scoped memory for tpu_custom_call.1']
    #allocation5 [shape = 's32[1]{0}', space=sflag, size = 0x4, scoped, tag = 'scoped memory for tpu_custom_call.1']
    #allocation6 [shape = 'u8[32768]{0}', space=vmem, size = 0x8000, scoped, tag = 'input window, operand 4, single buffered']
    #allocation7 [shape = 's32[1]{0}', space=sflag, size = 0x4, scoped, tag = 'scoped memory for tpu_custom_call.1']
    #allocation8 [shape = 'u8[1024]{0}', space=vmem, size = 0x400, scoped, tag = 'output window, operand 0, single buffered']
    %14 = vsyncpa [#allocation4], 0
    %15 = vsyncpa [#allocation7], 0
    %16 = vsyncpa [#allocation5], 0
    // Predicated region
    $region2: #{tpu_custom_call.1} parent=1 // pred_check
      _
    $region3: #{tpu_custom_call.1} parent=1 // pred_check_branch
      %18 = sbr.rel (0) target = $region5
    $region4: #{tpu_custom_call.1} parent=1 // pred_region
      _
    $region5: #{tpu_custom_call.1} parent=1 // pred_fallthru
      _
    // Predicated region
    $region6: #{tpu_custom_call.1} parent=1 // pred_check
      _
    $region7: #{tpu_custom_call.1} parent=1 // pred_check_branch
      %20 = sbr.rel (0) target = $region9
    $region8: #{tpu_custom_call.1} parent=1 // pred_region
      _
    $region9: #{tpu_custom_call.1} parent=1 // pred_fallthru
      _
    // Predicated region
    $region10: #{tpu_custom_call.1} parent=1 // pred_check
      _
    $region11: #{tpu_custom_call.1} parent=1 // pred_check_branch
      %22 = sbr.rel (0) target = $region13
    $region12: #{tpu_custom_call.1} parent=1 // pred_region
      %s24 = ssub.s32 768, 768
      %25 = vsyncadd [#allocation4], %s24
      %s26 = sshll.u32 [#allocation3], 4
      %s27 = int_to_ptr.vmem [resolvable:$true] %s26
      %32 = dma.hbm_to_vmem [thread:$0]  %s2, 768, %s27, [#allocation4], 64, 64, 4
    $region13: #{tpu_custom_call.1} parent=1 // pred_fallthru
      _
    // Predicated region
    $region14: #{tpu_custom_call.1} parent=1 // pred_check
      _
    $region15: #{tpu_custom_call.1} parent=1 // pred_check_branch
      %34 = sbr.rel (0) target = $region17
    $region16: #{tpu_custom_call.1} parent=1 // pred_region
      _
    $region17: #{tpu_custom_call.1} parent=1 // pred_fallthru
      _
    // Predicated region
    $region18: #{tpu_custom_call.1} parent=1 // pred_check
      _
    $region19: #{tpu_custom_call.1} parent=1 // pred_check_branch
      %36 = sbr.rel (0) target = $region21
    $region20: #{tpu_custom_call.1} parent=1 // pred_region
      %s38 = ssub.s32 1024, 1024
      %39 = vsyncadd [#allocation7], %s38
      %s40 = sshll.u32 [#allocation6], 4
      %s41 = int_to_ptr.vmem [resolvable:$true] %s40
      %46 = dma.hbm_to_vmem [thread:$0]  %s4, 1024, %s41, [#allocation7], 64, 64, 4
    $region21: #{tpu_custom_call.1} parent=1 // pred_fallthru
      _
    // Predicated region
    $region22: #{tpu_custom_call.1} parent=1 // pred_check
      _
    $region23: #{tpu_custom_call.1} parent=1 // pred_check_branch
      %48 = sbr.rel (0) target = $region25
    $region24: #{tpu_custom_call.1} parent=1 // pred_region
      _
    $region25: #{tpu_custom_call.1} parent=1 // pred_fallthru
      _
    // Predicated region
    $region26: #{tpu_custom_call.1} parent=1 // pred_check
      _
    $region27: #{tpu_custom_call.1} parent=1 // pred_check_branch
      %50 = sbr.rel (0) target = $region29
    $region28: #{tpu_custom_call.1} parent=1 // pred_region
      _
    $region29: #{tpu_custom_call.1} parent=1 // pred_fallthru
      _
    // Predicated region
    $region30: #{tpu_custom_call.1} parent=1 // pred_check
      _
    $region31: #{tpu_custom_call.1} parent=1 // pred_check_branch
      %52 = sbr.rel (0) target = $region33
    $region32: #{tpu_custom_call.1} parent=1 // pred_region
      _
    $region33: #{tpu_custom_call.1} parent=1 // pred_fallthru
      _
    // Predicated region
    $region34: #{tpu_custom_call.1} parent=1 // pred_check
      _
    $region35: #{tpu_custom_call.1} parent=1 // pred_check_branch
      %54 = sbr.rel (0) target = $region37
    $region36: #{tpu_custom_call.1} parent=1 // pred_region
      %55 = dma.done [#allocation4], 768
    $region37: #{tpu_custom_call.1} parent=1 // pred_fallthru
      _
    // Predicated region
    $region38: #{tpu_custom_call.1} parent=1 // pred_check
      _
    $region39: #{tpu_custom_call.1} parent=1 // pred_check_branch
      %57 = sbr.rel (0) target = $region41
    $region40: #{tpu_custom_call.1} parent=1 // pred_region
      %58 = dma.done [#allocation7], 1024
    $region41: #{tpu_custom_call.1} parent=1 // pred_fallthru
      _
    %v60 = vld [vmem:[%s0] sm:$0xf]
    %v61 = vld [vmem:[%s0 + $0x4] sm:$0x1]
    %v62 = vld [vmem:[%s0 + $0x8] sm:$0xf]
    %v63 = vld [vmem:[%s0 + $0xc] sm:$0x1]
    %v68 = vunpack.c.l.b16 %v60
    %v69 = vunpack.c.l.b16 %v61
    %v70 = vunpack.c.l.b16 %v62
    %v71 = vunpack.c.l.b16 %v63
    %v72 = vpack.c.b16 %v69, %v68
    %v73 = vpack.c.b16 %v71, %v70
    %v75 = vshrl.u32 %v72, 16
    %v77 = vshll.u32 %v72, 16
    %v79 = vrot.slane %v77, 1
    %v80 = vor.u32 %v75, %v79
    %v82 = vshrl.u32 %v73, 16
    %v84 = vshll.u32 %v73, 16
    %v86 = vrot.slane %v84, 1
    %v87 = vor.u32 %v82, %v86
    %88 = vrot.lane.b32.xlu0 %v80, 32
    %v89 = vpop.permute.xlu0 %88
    %90 = vrot.lane.b32.xlu0 %v87, 32
    %v91 = vpop.permute.xlu0 %90
    %v92 = vrot.slane %v72, 1
    %v93 = vrot.slane %v73, 1
    %94 = vrot.lane.b32.xlu0 %v92, 64
    %v95 = vpop.permute.xlu0 %94
    %96 = vrot.lane.b32.xlu0 %v93, 64
    %v97 = vpop.permute.xlu0 %96
    %vm98 = vcmask 261120
    %v101 = vsel %vm98, %v60, %v89
    %v104 = vsel %vm98, %v62, %v91
    %vm105 = vcmask 523264
    %v107 = vsel %vm105, %v101, %v95
    %v109 = vsel %vm105, %v104, %v97
    %v110 = vld [vmem:[#allocation3] sm:$0xf]
    %v111 = vld [vmem:[#allocation3 + $0x4] sm:$0xf]
    %v112 = vld [vmem:[#allocation3 + $0x8] sm:$0xf]
    %v113 = vld [vmem:[#allocation3 + $0xc] sm:$0xf]
    %v114 = vld [vmem:[#allocation3 + $0x10] sm:$0xf]
    %v115 = vld [vmem:[#allocation3 + $0x14] sm:$0xf]
    %v116 = vld [vmem:[#allocation3 + $0x18] sm:$0xf]
    %v117 = vld [vmem:[#allocation3 + $0x1c] sm:$0xf]
    %v118 = vld [vmem:[#allocation3 + $0x20] sm:$0xf]
    %v119 = vld [vmem:[#allocation3 + $0x24] sm:$0xf]
    %v120 = vld [vmem:[#allocation3 + $0x28] sm:$0xf]
    %v121 = vld [vmem:[#allocation3 + $0x2c] sm:$0xf]
    %v122 = vld [vmem:[%s3] sm:$0x1]
    %v124 = vlaneseq
    %v125 = vshrl.u32 %v124, 7
    %v126 = vsub.s32 0, %v125
    %v127 = vrot.slane %v122, %v126
    %v131 = vunpack.c.l.b16 %v107
    %v132 = vunpack.c.l.b16 %v109
    %v133 = vpack.c.b16 %v132, %v131
    %v146 = vunpack.c.l.b16 %v110
    %v147 = vunpack.c.l.b16 %v111
    %v148 = vunpack.c.l.b16 %v112
    %v149 = vunpack.c.l.b16 %v113
    %v150 = vunpack.c.l.b16 %v114
    %v151 = vunpack.c.l.b16 %v115
    %v152 = vunpack.c.l.b16 %v116
    %v153 = vunpack.c.l.b16 %v117
    %v154 = vunpack.c.l.b16 %v118
    %v155 = vunpack.c.l.b16 %v119
    %v156 = vunpack.c.l.b16 %v120
    %v157 = vunpack.c.l.b16 %v121
    %v158 = vpack.c.b16 %v147, %v146
    %v159 = vpack.c.b16 %v149, %v148
    %v160 = vpack.c.b16 %v151, %v150
    %v161 = vpack.c.b16 %v153, %v152
    %v162 = vpack.c.b16 %v155, %v154
    %v163 = vpack.c.b16 %v157, %v156
    %vm170 = vcmask 785408
    %v172 = vsel %vm170, %v133, 0
    %174 = vmatprep.subr.bf16.mxu0 0
    %175 = vmatpush1.bf16.msra.mxu0 %v158
    %176 = vmatprep.subr.bf16.mxu0 0
    %177 = vmatpush1.bf16.msra.mxu0 %v159
    %178 = vmatprep.subr.bf16.mxu0 0
    %179 = vmatpush1.bf16.msra.mxu0 %v160
    %180 = vmatprep.subr.bf16.mxu0 0
    %181 = vmatpush1.bf16.msra.mxu0 %v161
    %182 = vmatprep.subr.bf16.mxu0 0
    %183 = vmatpush1.bf16.msra.mxu0 %v162
    %184 = vmatprep.subr.bf16.mxu0 0
    %185 = vmatpush1.bf16.msra.mxu0 %v163
    %186 = vmatprep.subr.bf16.mxu0 0
    %187 = vmatpush1.bf16.msra.mxu0 0
    %188 = vmatprep.subr.bf16.mxu0 0
    %189 = vmatpush1.bf16.msra.mxu0 0
    %190 = vmatprep.subr.bf16.mxu0 0
    %191 = vmatpush1.bf16.msra.mxu0 0
    %192 = vmatprep.subr.bf16.mxu0 0
    %193 = vmatpush1.bf16.msra.mxu0 0
    %194 = vmatprep.subr.bf16.mxu0 0
    %195 = vmatpush1.bf16.msra.mxu0 0
    %196 = vmatprep.subr.bf16.mxu0 0
    %197 = vmatpush1.bf16.msra.mxu0 0
    %198 = vmatprep.subr.bf16.mxu0 0
    %199 = vmatpush1.bf16.msra.mxu0 0
    %200 = vmatprep.subr.bf16.mxu0 0
    %201 = vmatpush1.bf16.msra.mxu0 0
    %202 = vmatprep.subr.bf16.mxu0 0
    %203 = vmatpush1.bf16.msra.mxu0 0
    %204 = vmatprep.subr.bf16.mxu0 0
    %205 = vmatpush1.bf16.msra.mxu0 0
    %206 = vmatprep.mubr.bf16.mxu0 0
    %207 = vmatmul.mubr.bf16.gmra.mrb[0].mxu0 %v172
    %v208 = vpop.f32.mrb[0].mxu0
    %v209 = vadd.f32 %v127, %v208
    %v210 = vpop.f32.mrb[0].mxu0
    %v211 = vpop.f32.mrb[0].mxu0
    %v212 = vadd.f32 %v127, %v211
    %v213 = vpop.f32.mrb[0].mxu0
    %214 = vdwg.mxu0
    %v215 = vmax.f32 %v209, 0.0
    %v216 = vmax.f32 %v212, 0.0
    %v217 = vpack.c.bf16 %v216, %v215
    %v218 = vld [vmem:[#allocation6] sm:$0xf]
    %v219 = vld [vmem:[#allocation6 + $0x4] sm:$0xf]
    %v220 = vld [vmem:[#allocation6 + $0x8] sm:$0xf]
    %v221 = vld [vmem:[#allocation6 + $0xc] sm:$0xf]
    %v222 = vld [vmem:[#allocation6 + $0x10] sm:$0xf]
    %v223 = vld [vmem:[#allocation6 + $0x14] sm:$0xf]
    %v224 = vld [vmem:[#allocation6 + $0x18] sm:$0xf]
    %v225 = vld [vmem:[#allocation6 + $0x1c] sm:$0xf]
    %v226 = vld [vmem:[#allocation6 + $0x20] sm:$0xf]
    %v227 = vld [vmem:[#allocation6 + $0x24] sm:$0xf]
    %v228 = vld [vmem:[#allocation6 + $0x28] sm:$0xf]
    %v229 = vld [vmem:[#allocation6 + $0x2c] sm:$0xf]
    %v230 = vld [vmem:[#allocation6 + $0x30] sm:$0xf]
    %v231 = vld [vmem:[#allocation6 + $0x34] sm:$0xf]
    %v232 = vld [vmem:[#allocation6 + $0x38] sm:$0xf]
    %v233 = vld [vmem:[#allocation6 + $0x3c] sm:$0xf]
    %v234 = vld [vmem:[%s5] sm:$0x1]
    %v236 = vlaneseq
    %v237 = vshrl.u32 %v236, 7
    %v238 = vsub.s32 0, %v237
    %v239 = vrot.slane %v234, %v238
    %v257 = vunpack.c.l.b16 %v218
    %v258 = vunpack.c.l.b16 %v219
    %v259 = vunpack.c.l.b16 %v220
    %v260 = vunpack.c.l.b16 %v221
    %v261 = vunpack.c.l.b16 %v222
    %v262 = vunpack.c.l.b16 %v223
    %v263 = vunpack.c.l.b16 %v224
    %v264 = vunpack.c.l.b16 %v225
    %v265 = vunpack.c.l.b16 %v226
    %v266 = vunpack.c.l.b16 %v227
    %v267 = vunpack.c.l.b16 %v228
    %v268 = vunpack.c.l.b16 %v229
    %v269 = vunpack.c.l.b16 %v230
    %v270 = vunpack.c.l.b16 %v231
    %v271 = vunpack.c.l.b16 %v232
    %v272 = vunpack.c.l.b16 %v233
    %v273 = vpack.c.b16 %v258, %v257
    %v274 = vpack.c.b16 %v260, %v259
    %v275 = vpack.c.b16 %v262, %v261
    %v276 = vpack.c.b16 %v264, %v263
    %v277 = vpack.c.b16 %v266, %v265
    %v278 = vpack.c.b16 %v268, %v267
    %v279 = vpack.c.b16 %v270, %v269
    %v280 = vpack.c.b16 %v272, %v271
    %289 = vmatprep.subr.bf16.mxu0 0
    %290 = vmatpush1.bf16.msra.mxu0 %v273
    %291 = vmatprep.subr.bf16.mxu0 0
    %292 = vmatpush1.bf16.msra.mxu0 %v274
    %293 = vmatprep.subr.bf16.mxu0 0
    %294 = vmatpush1.bf16.msra.mxu0 %v275
    %295 = vmatprep.subr.bf16.mxu0 0
    %296 = vmatpush1.bf16.msra.mxu0 %v276
    %297 = vmatprep.subr.bf16.mxu0 0
    %298 = vmatpush1.bf16.msra.mxu0 %v277
    %299 = vmatprep.subr.bf16.mxu0 0
    %300 = vmatpush1.bf16.msra.mxu0 %v278
    %301 = vmatprep.subr.bf16.mxu0 0
    %302 = vmatpush1.bf16.msra.mxu0 %v279
    %303 = vmatprep.subr.bf16.mxu0 0
    %304 = vmatpush1.bf16.msra.mxu0 %v280
    %305 = vmatprep.subr.bf16.mxu0 0
    %306 = vmatpush1.bf16.msra.mxu0 0
    %307 = vmatprep.subr.bf16.mxu0 0
    %308 = vmatpush1.bf16.msra.mxu0 0
    %309 = vmatprep.subr.bf16.mxu0 0
    %310 = vmatpush1.bf16.msra.mxu0 0
    %311 = vmatprep.subr.bf16.mxu0 0
    %312 = vmatpush1.bf16.msra.mxu0 0
    %313 = vmatprep.subr.bf16.mxu0 0
    %314 = vmatpush1.bf16.msra.mxu0 0
    %315 = vmatprep.subr.bf16.mxu0 0
    %316 = vmatpush1.bf16.msra.mxu0 0
    %317 = vmatprep.subr.bf16.mxu0 0
    %318 = vmatpush1.bf16.msra.mxu0 0
    %319 = vmatprep.subr.bf16.mxu0 0
    %320 = vmatpush1.bf16.msra.mxu0 0
    %321 = vmatprep.mubr.bf16.mxu0 0
    %322 = vmatmul.mubr.bf16.gmra.mrb[0].mxu0 %v217
    %v323 = vpop.f32.mrb[0].mxu0
    %v324 = vadd.f32 %v239, %v323
    %v325 = vpop.f32.mrb[0].mxu0
    %v326 = vpop.f32.mrb[0].mxu0
    %v327 = vadd.f32 %v239, %v326
    %v328 = vpop.f32.mrb[0].mxu0
    %329 = vdwg.mxu0
    %v330 = vtanh.pop %v324
    %v331 = vtanh.pop %v327
    %v332 = vld [vmem:[%s6] sm:$0x1]
    %v334 = vlaneseq
    %v335 = vshrl.u32 %v334, 7
    %v336 = vsub.s32 0, %v335
    %v337 = vrot.slane %v332, %v336
    %v339 = vmul.f32 %v330, %v337
    %v340 = vmul.f32 %v331, %v337
    %341 = vadd.xlane.f32.xlu0 %v339
    %v342 = vpop.xlane.xlu0 %341
    %343 = vadd.xlane.f32.xlu0 %v340
    %v344 = vpop.xlane.xlu0 %343
    %s345 = sld [smem:[#allocation2]]
    %v346 = vstv %s345
    %v347 = vadd.f32 %v342, %v346
    %v348 = vadd.f32 %v344, %v346
    %v349 = vld [vmem:[%s1] sm:$0x3]
    %vm350 = vcmp.lt.f32.partialorder %v349, 0.5
    %v353 = vlaneseq
    %v354 = vand.u32 %v353, 127
    %v355 = vlaneseq
    %v356 = vshrl.u32 %v355, 7
    %v357 = vsub.s32 %v354, %v356
    %v358 = vrot.slane %v347, %v357
    %v359 = vlaneseq
    %v360 = vshrl.u32 %v359, 7
    %v361 = vsub.s32 %v354, %v360
    %v362 = vrot.slane %v348, %v361
    %vm363 = vcmask 1041409
    %v364 = vsel %vm363, %v362, %v358
    %v366 = vsel %vm350, -1e+09, %v364
    %vm367 = vcmask 58368
    %v368 = vsel %vm367, %v366, -inf
    %369 = vmax.xlane.f32.xlu0 %v368
    %v370 = vpop.xlane.xlu0 %369
    %v371 = vsub.f32 %v366, %v370
    %v372 = vmul.f32 %v371, 1.442695
    %v373 = vpow.pop %v372
    %v374 = vsel %vm367, %v373, 0.0
    %375 = vadd.xlane.f32.xlu0 %v374
    %v376 = vpop.xlane.xlu0 %375
    %v377 = vrcp.pop %v376
    %v378 = vmul.f32 %v373, %v377
    %v379 = vlaneseq
    %v380 = vshrl.u32 %v379, 7
    %v381 = vsub.s32 0, %v380
    %v382 = vrot.slane %v378, %v381
    %384 = vbcast.lane.b32.xlu0 %v382, 256
    %v385 = vpop.permute.xlu0 %384
    %v386 = vlaneseq
    %v387 = vshrl.u32 %v386, 7
    %v388 = vsub.s32 1, %v387
    %v389 = vrot.slane %v378, %v388
    %391 = vbcast.lane.b32.xlu0 %v389, 256
    %v392 = vpop.permute.xlu0 %391
    %v393 = vmul.f32 %v385, %v215
    %v394 = vmul.f32 %v392, %v216
    %v395 = vrot.slane %v393, 4
    %v396 = vadd.f32 %v393, %v395
    %v397 = vrot.slane %v396, 2
    %v398 = vadd.f32 %v396, %v397
    %v399 = vrot.slane %v398, 1
    %v400 = vadd.f32 %v398, %v399
    %v401 = vrot.slane %v394, 4
    %v402 = vadd.f32 %v394, %v401
    %v403 = vrot.slane %v402, 2
    %v404 = vadd.f32 %v402, %v403
    %v405 = vrot.slane %v404, 1
    %v406 = vadd.f32 %v404, %v405
    %v409 = vsel %vm363, %v406, %v400
    %411 = vst [vmem:[#allocation8] sm:$0x3] %v409
    // Predicated region
    $region42: #{tpu_custom_call.1} parent=1 // pred_check
      _
    $region43: #{tpu_custom_call.1} parent=1 // pred_check_branch
      %413 = sbr.rel (0) target = $region45
    $region44: #{tpu_custom_call.1} parent=1 // pred_region
      %s415 = ssub.s32 32, 32
      %416 = vsyncadd [#allocation5], %s415
      %s418 = sshll.u32 [#allocation8], 4
      %s419 = int_to_ptr.vmem [resolvable:$true] %s418
      %421 = dma.vmem_to_hbm [thread:$0]  %s419, 32, %s8, [#allocation5]
    $region45: #{tpu_custom_call.1} parent=1 // pred_fallthru
      _
    // Predicated region
    $region46: #{tpu_custom_call.1} parent=1 // pred_check
      _
    $region47: #{tpu_custom_call.1} parent=1 // pred_check_branch
      %423 = sbr.rel (0) target = $region49
    $region48: #{tpu_custom_call.1} parent=1 // pred_region
      %424 = dma.done [#allocation5], 32
    $region49: #{tpu_custom_call.1} parent=1 // pred_fallthru
      _
    %425 = vsyncpa [#allocation4], 1
    %426 = vsyncpa [#allocation7], 1
    %427 = vsyncpa [#allocation5], 1

</llo_original>
